<compile_context>
chip_gen: v7x
topology: tpu7x:2x2x1
jax: 0.10.0
libtpu: 0.0.40
codegen_flags: <defaults>
</compile_context>

<pallas_src>
import math
import functools

import jax
import jax.numpy as jnp
from jax.experimental import pallas as pl
from jax.experimental.pallas import tpu as pltpu

_LANES = 128
_SUBLANES = 8
_MAX_BLOCK_ROWS = 4096                    # 4096 x 128 f32 = 2 MiB per block
_FUSED_MAX_BYTES = 1 << 20                # <=1 MiB slab -> single no-grid launch
_VMEM_LIMIT_BYTES = 32 * 1024 * 1024      # safe scoped-VMEM on v5e/v6e/v7x
_LOG10_SCALE = 10.0 / math.log(10.0)      # 10*log10(x) == _LOG10_SCALE * ln(x)


def _round_up(x, m):
    return ((x + m - 1) // m) * m


# ---------------------------------------------------------------------------
# Fused single-launch kernel (tiny slabs only: whole slab resident in VMEM).
# ---------------------------------------------------------------------------
def _fused_kernel(x_ref, o_ref, *, ref_db, amin, top_db):
    x = x_ref[...]
    log_spec = _LOG10_SCALE * jnp.log(jnp.maximum(x, amin)) - ref_db
    if top_db is None:
        o_ref[...] = log_spec
    else:
        # log is monotone: max(log_spec) == scale*log(max(x, amin)) - ref_db.
        floor = (_LOG10_SCALE * jnp.log(jnp.maximum(jnp.max(x), amin))
                 - ref_db - top_db)
        o_ref[...] = jnp.maximum(log_spec, floor)


# ---------------------------------------------------------------------------
# Gridded two-pass path (pipelined, megacore-parallel).
# ---------------------------------------------------------------------------
def _partial_max_kernel(x_ref, pmax_ref, *, amin, total_rows, block_rows):
    # Per-block (8, 128) partial max: vector max across vregs (pure VPU).
    mag = jnp.maximum(x_ref[...], amin)
    if total_rows % block_rows:
        # Boundary block: rows past the array extent hold garbage -> mask to
        # amin (every real element is >= amin, so the max is unaffected).
        row = (pl.program_id(0) * block_rows
               + jax.lax.broadcasted_iota(jnp.int32, (block_rows, _LANES), 0))
        mag = jnp.where(row < total_rows, mag, amin)
    pmax_ref[...] = jnp.max(
        mag.reshape(block_rows // _SUBLANES, _SUBLANES, _LANES), axis=0)


def _db_floor_kernel(floor_ref, x_ref, o_ref, *, ref_db, amin):
    # Boundary-block garbage rows produce garbage outputs whose stores are
    # masked by Pallas, so no explicit row mask is needed here.
    mag = jnp.maximum(x_ref[...], amin)
    o_ref[...] = jnp.maximum(_LOG10_SCALE * jnp.log(mag) - ref_db, floor_ref[0])


def _db_only_kernel(x_ref, o_ref, *, ref_db, amin):
    o_ref[...] = _LOG10_SCALE * jnp.log(jnp.maximum(x_ref[...], amin)) - ref_db


# ---------------------------------------------------------------------------
# Wrapper
# ---------------------------------------------------------------------------
def power_to_db(S, ref=1.0, amin=1e-10, top_db=80.0, *, force_two_pass=False):
    if amin <= 0:
        raise ValueError("amin must be strictly positive")
    if top_db is not None and top_db < 0:
        raise ValueError("top_db must be non-negative")
    if callable(ref):
        raise NotImplementedError("callable `ref` is not supported")
    # TODO(synk): complex-input branch (phase-discard warning) not supported.

    ref_db = 10.0 * math.log10(max(abs(float(ref)), amin))

    # Note: like the torch module, this casts to float32 (float64 downcast).
    S = jnp.asarray(S, jnp.float32)
    orig_shape = S.shape
    n = S.size
    flat = S.reshape(-1)

    ragged = (n % _LANES) != 0
    if ragged:
        # TODO(synk): n % 128 != 0 still pays one pad + one slice HBM pass.
        padded = _round_up(n, _LANES)
        flat = jnp.pad(flat, (0, padded - n))   # zeros clamp to amin; safe
    else:
        padded = n
    rows = padded // _LANES
    x2d = flat.reshape(rows, _LANES)            # lane-dense, contiguous reshape

    slab_bytes = rows * _LANES * 4
    use_fused = (not force_two_pass) and (slab_bytes <= _FUSED_MAX_BYTES)

    if use_fused:
        out2d = pl.pallas_call(
            functools.partial(_fused_kernel, ref_db=ref_db, amin=amin,
                              top_db=top_db),
            out_shape=jax.ShapeDtypeStruct((rows, _LANES), jnp.float32),
        )(x2d)
    else:
        block_rows = min(_MAX_BLOCK_ROWS, _round_up(rows, _SUBLANES))
        grid = (pl.cdiv(rows, block_rows),)
        tile_spec = pl.BlockSpec((block_rows, _LANES), lambda i: (i, 0))
        cparams = pltpu.CompilerParams(
            dimension_semantics=("parallel",),
            vmem_limit_bytes=_VMEM_LIMIT_BYTES)

        if top_db is None:
            out2d = pl.pallas_call(
                functools.partial(_db_only_kernel, ref_db=ref_db, amin=amin),
                out_shape=jax.ShapeDtypeStruct((rows, _LANES), jnp.float32),
                grid=grid,
                in_specs=[tile_spec],
                out_specs=tile_spec,
                compiler_params=cparams,
            )(x2d)
        else:
            # Pass 1: per-block partial maxima (parallel grid).
            partials = pl.pallas_call(
                functools.partial(_partial_max_kernel, amin=amin,
                                  total_rows=rows, block_rows=block_rows),
                out_shape=jax.ShapeDtypeStruct(
                    (grid[0] * _SUBLANES, _LANES), jnp.float32),
                grid=grid,
                in_specs=[tile_spec],
                out_specs=pl.BlockSpec((_SUBLANES, _LANES), lambda i: (i, 0)),
                compiler_params=cparams,
            )(x2d)

            # Tiny final reduce; floor scalar computed exactly once.
            floor = (_LOG10_SCALE * jnp.log(jnp.max(partials))
                     - ref_db - top_db).astype(jnp.float32).reshape(1)

            # Pass 2: elementwise dB + floor clamp (floor lands in SMEM).
            out2d = pl.pallas_call(
                functools.partial(_db_floor_kernel, ref_db=ref_db, amin=amin),
                out_shape=jax.ShapeDtypeStruct((rows, _LANES), jnp.float32),
                grid=grid,
                in_specs=[pl.BlockSpec(memory_space=pltpu.SMEM), tile_spec],
                out_specs=tile_spec,
                compiler_params=cparams,
            )(floor, x2d)

    out_flat = out2d.reshape(-1)
    if ragged:
        out_flat = out_flat[:n]
    return out_flat.reshape(orig_shape)


# Pure-JAX reference for verification
def _power_to_db_ref(S, ref=1.0, amin=1e-10, top_db=80.0):
    S = jnp.asarray(S, jnp.float32)
    ref_value = jnp.abs(jnp.float32(ref))
    log_spec = 10.0 * jnp.log10(jnp.maximum(S, amin))
    log_spec = log_spec - 10.0 * jnp.log10(jnp.maximum(ref_value, amin))
    if top_db is not None:
        log_spec = jnp.maximum(log_spec, jnp.max(log_spec) - top_db)
    return log_spec


if __name__ == "__main__":
    key = jax.random.PRNGKey(0)
    # Power-spectrogram-like input: non-negative, wide dynamic range.
    x = jax.random.uniform(key, (2, 4, 16, 16), dtype=jnp.float32)
    x = x * x * 1e3  # spread the range so the top_db clamp is exercised

    expected = _power_to_db_ref(x)

    # Fused (single-launch) path — the one taken at this size (8 KiB slab).
    out = jax.block_until_ready(power_to_db(x))
    assert out.shape == x.shape and out.dtype == jnp.float32
    assert jnp.allclose(out, expected, rtol=1e-5, atol=1e-4), (
        float(jnp.max(jnp.abs(out - expected))))

    # Gridded two-pass path, forced at small size to verify correctness.
    out2 = jax.block_until_ready(power_to_db(x, force_two_pass=True))
    assert jnp.allclose(out2, expected, rtol=1e-5, atol=1e-4), (
        float(jnp.max(jnp.abs(out2 - expected))))

    # top_db=None branch.
    out3 = jax.block_until_ready(power_to_db(x, top_db=None))
    expected3 = _power_to_db_ref(x, top_db=None)
    assert jnp.allclose(out3, expected3, rtol=1e-5, atol=1e-4), (
        float(jnp.max(jnp.abs(out3 - expected3))))

    # Ragged element count (n % 128 != 0): exercises pad fallback + the
    # boundary-row masking of the two-pass max kernel.
    key2 = jax.random.PRNGKey(1)
    y = jax.random.uniform(key2, (3, 5, 7), dtype=jnp.float32) * 1e2
    expected_y = _power_to_db_ref(y)
    out4 = jax.block_until_ready(power_to_db(y))
    assert out4.shape == y.shape
    assert jnp.allclose(out4, expected_y, rtol=1e-5, atol=1e-4), (
        float(jnp.max(jnp.abs(out4 - expected_y))))
    out5 = jax.block_until_ready(power_to_db(y, force_two_pass=True))
    assert jnp.allclose(out5, expected_y, rtol=1e-5, atol=1e-4), (
        float(jnp.max(jnp.abs(out5 - expected_y))))

    print("KERNEL_OK")
</pallas_src>

<mosaic_0001>
module attributes {stable_mosaic.version = 11 : i64} {
  func.func @_fused_kernel(%arg0: memref<16x128xf32, #tpu.memory_space<vmem>>, %arg1: memref<16x128xf32, #tpu.memory_space<vmem>>) attributes {dimension_semantics = [], scalar_prefetch = 0 : i64, scratch_operands = 0 : i64, tpu.core_type = #tpu.core_type<tc>} {
    %c0 = arith.constant 0 : index
    %c0_0 = arith.constant 0 : index
    %0 = vector.load %arg0[%c0, %c0_0] : memref<16x128xf32, #tpu.memory_space<vmem>>, vector<16x128xf32>
    %cst = arith.constant 1.000000e-10 : f32
    %1 = vector.broadcast %cst : f32 to vector<16x128xf32>
    %2 = arith.maximumf %0, %1 : vector<16x128xf32>
    %3 = math.log %2 : vector<16x128xf32>
    %cst_1 = arith.constant 4.34294462 : f32
    %4 = vector.broadcast %cst_1 : f32 to vector<16x128xf32>
    %5 = arith.mulf %4, %3 : vector<16x128xf32>
    %cst_2 = arith.constant 0.000000e+00 : f32
    %6 = vector.broadcast %cst_2 : f32 to vector<16x128xf32>
    %7 = arith.subf %5, %6 : vector<16x128xf32>
    %8 = vector.shape_cast %0 : vector<16x128xf32> to vector<1x16x128xf32>
    %cst_3 = arith.constant dense<0xFF800000> : vector<1xf32>
    %9 = vector.multi_reduction <maximumf>, %8, %cst_3 [1, 2] : vector<1x16x128xf32> to vector<1xf32>
    %10 = vector.shape_cast %9 : vector<1xf32> to vector<1x1x1xf32>
    %11 = vector.extract %10[0, 0, 0] : f32 from vector<1x1x1xf32>
    %cst_4 = arith.constant 1.000000e-10 : f32
    %12 = arith.maximumf %11, %cst_4 : f32
    %13 = math.log %12 : f32
    %cst_5 = arith.constant 4.34294462 : f32
    %14 = arith.mulf %cst_5, %13 : f32
    %cst_6 = arith.constant 0.000000e+00 : f32
    %15 = arith.subf %14, %cst_6 : f32
    %cst_7 = arith.constant 8.000000e+01 : f32
    %16 = arith.subf %15, %cst_7 : f32
    %17 = vector.broadcast %16 : f32 to vector<16x128xf32>
    %18 = arith.maximumf %7, %17 : vector<16x128xf32>
    %c0_8 = arith.constant 0 : index
    %c0_9 = arith.constant 0 : index
    %19 = vector.load %arg1[%c0_8, %c0_9] : memref<16x128xf32, #tpu.memory_space<vmem>>, vector<16x128xf32>
    tpu.vector_store %arg1[%c0_8, %c0_9], %18 {strides = array<i32>} : memref<16x128xf32, #tpu.memory_space<vmem>>, vector<16x128xf32>,
    return
  }
}

</mosaic_0001>

<llo_original>
// kernel: tpu_custom_call.1
$region0: #{tpu_custom_call.1}
  #allocation0 [shape = 'u32[]', space=smem, size = 0x4, offset = 0x4, fixed_abs, tag = 'smem constant byte address 0x4 - core index']
  #allocation1 [shape = 'u32[144,128]{1,0:T(1,128)}', space=vmem, size = 0x12000, scoped, tag = 'internal scratch']
  %s0 = inlined_call_operand.hbm [shape: f32[16,128], index: 0, kind: input, shape index: {}]
  %s1 = inlined_call_operand.hbm [shape: f32[16,128], index: 1, kind: output, shape index: {}]
  %s2 = sld [smem:[#allocation0]]
  $region18: #{tpu_custom_call.1} parent=0
    _
  %s4 = ssub.s32 1, %s2
  %s5 = scalar_select 0, %s4, %s2
  $region1: #{tpu_custom_call.1} parent=0
    #allocation2 [shape = 'u8[8192]{0}', space=vmem, size = 0x2000, scoped, tag = 'input window, operand 0, single buffered']
    #allocation3 [shape = 's32[1]{0}', space=sflag, size = 0x4, scoped, tag = 'scoped memory for tpu_custom_call.1']
    #allocation4 [shape = 's32[1]{0}', space=sflag, size = 0x4, scoped, tag = 'scoped memory for tpu_custom_call.1']
    #allocation5 [shape = 'u8[8192]{0}', space=vmem, size = 0x2000, scoped, tag = 'output window, operand 0, single buffered']
    %6 = vsyncpa [#allocation3], 0
    %7 = vsyncpa [#allocation4], 0
    // Predicated region
    $region2: #{tpu_custom_call.1} parent=1 // pred_check
      _
    $region3: #{tpu_custom_call.1} parent=1 // pred_check_branch
      %9 = sbr.rel (0) target = $region5
    $region4: #{tpu_custom_call.1} parent=1 // pred_region
      %s11 = ssub.s32 256, 256
      %12 = vsyncadd [#allocation3], %s11
      %s13 = sshll.u32 [#allocation2], 4
      %s14 = int_to_ptr.vmem [resolvable:$true] %s13
      %19 = dma.hbm_to_vmem [thread:$0]  %s0, 256, %s14, [#allocation3], 128, 128, 8
    $region5: #{tpu_custom_call.1} parent=1 // pred_fallthru
      _
    // Predicated region
    $region6: #{tpu_custom_call.1} parent=1 // pred_check
      _
    $region7: #{tpu_custom_call.1} parent=1 // pred_check_branch
      %21 = sbr.rel (0) target = $region9
    $region8: #{tpu_custom_call.1} parent=1 // pred_region
      %22 = dma.done [#allocation3], 256
    $region9: #{tpu_custom_call.1} parent=1 // pred_fallthru
      _
    %v23 = vld [vmem:[#allocation2] sm:$0xff]
    %v24 = vld [vmem:[#allocation2 + $0x8] sm:$0xff]
    %v25 = vmax.f32 %v23, 1e-10
    %v26 = vmax.f32 %v24, 1e-10
    %v27 = vlog2.pop %v25
    %v28 = vmul.f32 %v27, 0.6931472
    %v29 = vlog2.pop %v26
    %v30 = vmul.f32 %v29, 0.6931472
    %v31 = vmul.f32 %v28, 4.3429446
    %v32 = vmul.f32 %v30, 4.3429446
    %v33 = vmax.f32 %v23, %v24
    %34 = vmax.xlane.f32.xlu0 %v33
    %v35 = vpop.xlane.xlu0 %34
    %v36 = vrot.slane %v35, 4
    %v37 = vmax.f32 %v35, %v36
    %v38 = vrot.slane %v37, 2
    %v39 = vmax.f32 %v37, %v38
    %v40 = vrot.slane %v39, 1
    %v41 = vmax.f32 %v39, %v40
    %s42 = vtos %v41
    %s43 = smax.f32 %s42, 1e-10
    %v44 = vstv %s43
    %v45 = vlog2.pop %v44
    %v46 = vmul.f32 %v45, 0.6931472
    %s47 = vtos %v46
    %s48 = smul.f32 %s47, 4.3429446
    %s49 = ssub.f32 %s48, 80.0
    %v50 = vstv %s49
    %v51 = vmax.f32 %v31, %v50
    %v52 = vmax.f32 %v32, %v50
    %53 = vst [vmem:[#allocation5] sm:$0xff] %v51
    %54 = vst [vmem:[#allocation5 + $0x8] sm:$0xff] %v52
    // Predicated region
    $region10: #{tpu_custom_call.1} parent=1 // pred_check
      _
    $region11: #{tpu_custom_call.1} parent=1 // pred_check_branch
      %56 = sbr.rel (0) target = $region13
    $region12: #{tpu_custom_call.1} parent=1 // pred_region
      %s58 = ssub.s32 256, 256
      %59 = vsyncadd [#allocation4], %s58
      %s60 = sshll.u32 [#allocation5], 4
      %s61 = int_to_ptr.vmem [resolvable:$true] %s60
      %66 = dma.vmem_to_hbm [thread:$0]  %s61, 256, %s1, [#allocation4], 128, 128, 8
    $region13: #{tpu_custom_call.1} parent=1 // pred_fallthru
      _
    // Predicated region
    $region14: #{tpu_custom_call.1} parent=1 // pred_check
      _
    $region15: #{tpu_custom_call.1} parent=1 // pred_check_branch
      %68 = sbr.rel (0) target = $region17
    $region16: #{tpu_custom_call.1} parent=1 // pred_region
      %69 = dma.done [#allocation4], 256
    $region17: #{tpu_custom_call.1} parent=1 // pred_fallthru
      _
    %70 = vsyncpa [#allocation3], 1
    %71 = vsyncpa [#allocation4], 1

</llo_original>
